<compile_context>
chip_gen: v7x
topology: tpu7x:2x2x1
jax: 0.10.0
libtpu: 0.0.40
codegen_flags: <defaults>
</compile_context>

<pallas_src>
import functools

import numpy as np
import jax
import jax.numpy as jnp
from jax.experimental import pallas as pl
from jax.experimental.pallas import tpu as pltpu


# ----------------------------------------------------------------------------
# Buffer init (deterministic, mirrors the PyTorch __init__)
# ----------------------------------------------------------------------------
def make_positional_encoding(max_len: int, d_model: int) -> jnp.ndarray:
    position = jnp.arange(0, max_len, dtype=jnp.float32)[:, None]          # (L, 1)
    div_term = jnp.exp(
        jnp.arange(0, d_model, 2, dtype=jnp.float32) * (-np.log(10000.0) / d_model)
    )                                                                       # (D/2,)
    pe = jnp.zeros((max_len, d_model), dtype=jnp.float32)
    pe = pe.at[:, 0::2].set(jnp.sin(position * div_term))
    pe = pe.at[:, 1::2].set(jnp.cos(position * div_term))
    # pe.unsqueeze(0).transpose(0, 1) -> (max_len, 1, d_model)
    return pe[:, None, :]


# ----------------------------------------------------------------------------
# Pallas kernels (pure elementwise on lane-dense 2D tiles)
# ----------------------------------------------------------------------------
def _pe_add_kernel(x_ref, pe_ref, o_ref):
    o_ref[...] = (x_ref[...] + pe_ref[...]).astype(o_ref.dtype)


def _pe_add_dropout_kernel(x_ref, pe_ref, keep_ref, o_ref, *, scale: float):
    y = x_ref[...] + pe_ref[...]
    # Inverted dropout: multiply by keep-mask * 1/(1-p) (matches torch, incl. NaN prop).
    keep = keep_ref[...].astype(jnp.float32) * jnp.float32(scale)
    o_ref[...] = (y * keep).astype(o_ref.dtype)


# ----------------------------------------------------------------------------
# Tiling helper: largest divisor of S (preferring multiples of 8) whose
# per-buffer tile is ~<= target_bytes, so the pipeline has several grid steps
# on realistic shapes while each buffer stays small enough for v5e/v7x VMEM.
# ----------------------------------------------------------------------------
def _choose_tile_s(seq_len: int, row_bytes: int, target_bytes: int = 1 << 20) -> int:
    limit = max(1, min(seq_len, target_bytes // max(row_bytes, 1)))
    best = None
    for cand in range(limit, 0, -1):
        if seq_len % cand:
            continue
        if cand % 8 == 0:
            return cand
        if best is None:
            best = cand
    return best if best is not None else seq_len


# ----------------------------------------------------------------------------
# Wrapper
# ----------------------------------------------------------------------------
def positional_encoding_forward(x, pe, *, p: float = 0.1, training: bool = True,
                                rng=None, tile_s: int | None = None):
    """y = dropout(x + pe[:S]) for x of shape (S, B, D); pe of shape (max_len, 1, D)."""
    S, B, D = x.shape
    # Squeeze pe's size-1 batch dim, match the activation dtype, and pre-broadcast
    # over batch so every operand shares one lane-dense (S, B*D) layout.
    pe_2d = pe[:S, 0, :].astype(x.dtype)                                   # (S, D)
    pe_b = jnp.broadcast_to(pe_2d[:, None, :], (S, B, D)).reshape(S, B * D)
    x_2d = x.reshape(S, B * D)                                             # free reshape

    if tile_s is None:
        tile_s = _choose_tile_s(S, B * D * x.dtype.itemsize)
    assert S % tile_s == 0, "tile_s must divide seq_len"
    grid = (S // tile_s,)

    row_spec = pl.BlockSpec((tile_s, B * D), lambda i: (i, 0))
    out_shape = jax.ShapeDtypeStruct((S, B * D), x.dtype)
    cparams = pltpu.CompilerParams(
        dimension_semantics=("parallel",),          # grid steps are independent
        vmem_limit_bytes=32 * 1024 * 1024,          # fits v5e/v6e/v7x scoped VMEM
    )

    if training and p > 0.0:
        if rng is None:
            raise ValueError("training-mode dropout requires an rng key")
        keep_prob = 1.0 - float(p)
        scale = 0.0 if keep_prob <= 0.0 else 1.0 / keep_prob   # p >= 1 -> all zeros
        keep = jax.random.bernoulli(rng, max(keep_prob, 0.0), (S, B * D))
        keep = keep.astype(jnp.int8)                            # 1 byte/elem HBM stream
        out_2d = pl.pallas_call(
            functools.partial(_pe_add_dropout_kernel, scale=scale),
            out_shape=out_shape,
            grid=grid,
            in_specs=[row_spec, row_spec, row_spec],
            out_specs=row_spec,
            compiler_params=cparams,
        )(x_2d, pe_b, keep)
    else:
        out_2d = pl.pallas_call(
            _pe_add_kernel,
            out_shape=out_shape,
            grid=grid,
            in_specs=[row_spec, row_spec],
            out_specs=row_spec,
            compiler_params=cparams,
        )(x_2d, pe_b)

    return out_2d.reshape(S, B, D)


# ----------------------------------------------------------------------------
# Demo / self-check
# ----------------------------------------------------------------------------
if __name__ == "__main__":
    d_model = 32
    max_len = 5000
    seq_len = 8
    batch = 2
    dropout_p = 0.1

    root = jax.random.PRNGKey(0)
    x_key, drop_key = jax.random.split(root)
    x = jax.random.normal(x_key, (seq_len, batch, d_model), dtype=jnp.float32)
    pe = make_positional_encoding(max_len, d_model)

    # Eval mode (dropout = identity): exact broadcast-add semantics.
    y_eval = jax.block_until_ready(
        positional_encoding_forward(x, pe, p=dropout_p, training=False))
    ref = np.asarray(x + pe[:seq_len])
    np.testing.assert_allclose(np.asarray(y_eval), ref, rtol=1e-6, atol=1e-6)

    # Training mode (inverted dropout): every output is either 0 or (x+pe)/(1-p).
    y_train = jax.block_until_ready(
        positional_encoding_forward(x, pe, p=dropout_p, training=True, rng=drop_key))
    assert y_train.shape == x.shape and y_train.dtype == x.dtype
    y_np = np.asarray(y_train)
    scaled = ref / (1.0 - dropout_p)
    ok = np.isclose(y_np, 0.0, atol=1e-6) | np.isclose(y_np, scaled, rtol=1e-5, atol=1e-6)
    assert ok.all(), "dropout output must be 0 or scaled (x + pe)"

    print("KERNEL_OK")
</pallas_src>

<mosaic_0001>
module attributes {stable_mosaic.version = 11 : i64} {
  func.func @_pe_add_kernel(%arg0: i32, %arg1: memref<8x64xf32, #tpu.memory_space<vmem>>, %arg2: memref<8x64xf32, #tpu.memory_space<vmem>>, %arg3: memref<8x64xf32, #tpu.memory_space<vmem>>) attributes {dimension_semantics = [#tpu.dimension_semantics<parallel>], iteration_bounds = array<i64: 1>, scalar_prefetch = 0 : i64, scratch_operands = 0 : i64, tpu.core_type = #tpu.core_type<tc>, window_params = [{transform_indices = @transform_0, window_bounds = array<i64: 8, 64>}, {transform_indices = @transform_1, window_bounds = array<i64: 8, 64>}, {transform_indices = @transform_2, window_bounds = array<i64: 8, 64>}]} {
    %c0 = arith.constant 0 : index
    %c0_0 = arith.constant 0 : index
    %0 = vector.load %arg1[%c0, %c0_0] : memref<8x64xf32, #tpu.memory_space<vmem>>, vector<8x64xf32>
    %c0_1 = arith.constant 0 : index
    %c0_2 = arith.constant 0 : index
    %1 = vector.load %arg2[%c0_1, %c0_2] : memref<8x64xf32, #tpu.memory_space<vmem>>, vector<8x64xf32>
    %2 = arith.addf %0, %1 : vector<8x64xf32>
    %c0_3 = arith.constant 0 : index
    %c0_4 = arith.constant 0 : index
    %3 = vector.load %arg3[%c0_3, %c0_4] : memref<8x64xf32, #tpu.memory_space<vmem>>, vector<8x64xf32>
    tpu.vector_store %arg3[%c0_3, %c0_4], %2 {strides = array<i32>} : memref<8x64xf32, #tpu.memory_space<vmem>>, vector<8x64xf32>,
    return
  }
  func.func @transform_0(%arg0: i32) -> (i32, i32) {
    %c0_i32 = arith.constant 0 : i32
    %c0_i32_0 = arith.constant 0 : i32
    return %arg0, %c0_i32 : i32, i32
  }
  func.func @transform_1(%arg0: i32) -> (i32, i32) {
    %c0_i32 = arith.constant 0 : i32
    %c0_i32_0 = arith.constant 0 : i32
    return %arg0, %c0_i32 : i32, i32
  }
  func.func @transform_2(%arg0: i32) -> (i32, i32) {
    %c0_i32 = arith.constant 0 : i32
    %c0_i32_0 = arith.constant 0 : i32
    return %arg0, %c0_i32 : i32, i32
  }
}

</mosaic_0001>

<llo_original>
// kernel: tpu_custom_call.1
$region0: #{tpu_custom_call.1}
  #allocation0 [shape = 'u32[]', space=smem, size = 0x4, offset = 0x4, fixed_abs, tag = 'smem constant byte address 0x4 - core index']
  #allocation1 [shape = 'u32[144,128]{1,0:T(1,128)}', space=vmem, size = 0x12000, scoped, tag = 'internal scratch']
  %s0 = inlined_call_operand.hbm [shape: f32[8,64], index: 0, kind: input, shape index: {}]
  %s1 = inlined_call_operand.hbm [shape: f32[8,64], index: 1, kind: input, shape index: {}]
  %s2 = inlined_call_operand.hbm [shape: f32[8,64], index: 2, kind: output, shape index: {}]
  %s3 = sld [smem:[#allocation0]]
  $region26: #{tpu_custom_call.1} parent=0
    _
  %s5 = ssub.s32 1, %s3
  %s6 = scalar_select 0, %s5, %s3
  $region1: #{tpu_custom_call.1} parent=0
    #allocation2 [shape = 'u8[4096]{0}', space=vmem, size = 0x1000, scoped, tag = 'input window, operand 0, single buffered']
    #allocation3 [shape = 's32[1]{0}', space=sflag, size = 0x4, scoped, tag = 'scoped memory for tpu_custom_call.1']
    #allocation4 [shape = 's32[1]{0}', space=sflag, size = 0x4, scoped, tag = 'scoped memory for tpu_custom_call.1']
    #allocation5 [shape = 'u8[4096]{0}', space=vmem, size = 0x1000, scoped, tag = 'input window, operand 1, single buffered']
    #allocation6 [shape = 's32[1]{0}', space=sflag, size = 0x4, scoped, tag = 'scoped memory for tpu_custom_call.1']
    #allocation7 [shape = 'u8[4096]{0}', space=vmem, size = 0x1000, scoped, tag = 'output window, operand 0, single buffered']
    %7 = vsyncpa [#allocation3], 0
    %8 = vsyncpa [#allocation6], 0
    %9 = vsyncpa [#allocation4], 0
    // Predicated region
    $region2: #{tpu_custom_call.1} parent=1 // pred_check
      _
    $region3: #{tpu_custom_call.1} parent=1 // pred_check_branch
      %11 = sbr.rel (0) target = $region5
    $region4: #{tpu_custom_call.1} parent=1 // pred_region
      %s13 = ssub.s32 128, 128
      %14 = vsyncadd [#allocation3], %s13
      %s16 = sshll.u32 [#allocation2], 4
      %s17 = int_to_ptr.vmem [resolvable:$true] %s16
      %19 = dma.hbm_to_vmem [thread:$0]  %s0, 128, %s17, [#allocation3]
    $region5: #{tpu_custom_call.1} parent=1 // pred_fallthru
      _
    // Predicated region
    $region6: #{tpu_custom_call.1} parent=1 // pred_check
      _
    $region7: #{tpu_custom_call.1} parent=1 // pred_check_branch
      %21 = sbr.rel (0) target = $region9
    $region8: #{tpu_custom_call.1} parent=1 // pred_region
      %s23 = ssub.s32 128, 128
      %24 = vsyncadd [#allocation6], %s23
      %s26 = sshll.u32 [#allocation5], 4
      %s27 = int_to_ptr.vmem [resolvable:$true] %s26
      %29 = dma.hbm_to_vmem [thread:$0]  %s1, 128, %s27, [#allocation6]
    $region9: #{tpu_custom_call.1} parent=1 // pred_fallthru
      _
    // Predicated region
    $region10: #{tpu_custom_call.1} parent=1 // pred_check
      _
    $region11: #{tpu_custom_call.1} parent=1 // pred_check_branch
      %31 = sbr.rel (0) target = $region13
    $region12: #{tpu_custom_call.1} parent=1 // pred_region
      %32 = dma.done [#allocation3], 128
    $region13: #{tpu_custom_call.1} parent=1 // pred_fallthru
      _
    // Predicated region
    $region14: #{tpu_custom_call.1} parent=1 // pred_check
      _
    $region15: #{tpu_custom_call.1} parent=1 // pred_check_branch
      %34 = sbr.rel (0) target = $region17
    $region16: #{tpu_custom_call.1} parent=1 // pred_region
      %35 = dma.done [#allocation6], 128
    $region17: #{tpu_custom_call.1} parent=1 // pred_fallthru
      _
    %v36 = vld [vmem:[#allocation2] sm:$0xff]
    %v37 = vld [vmem:[#allocation5] sm:$0xff]
    %v38 = vadd.f32 %v36, %v37
    %vm39 = vcmask 523264
    %40 = vst.msk [vmem:[#allocation7] sm:$0xff] %vm39, %v38
    // Predicated region
    $region18: #{tpu_custom_call.1} parent=1 // pred_check
      _
    $region19: #{tpu_custom_call.1} parent=1 // pred_check_branch
      %42 = sbr.rel (0) target = $region21
    $region20: #{tpu_custom_call.1} parent=1 // pred_region
      %s44 = ssub.s32 128, 128
      %45 = vsyncadd [#allocation4], %s44
      %s47 = sshll.u32 [#allocation7], 4
      %s48 = int_to_ptr.vmem [resolvable:$true] %s47
      %50 = dma.vmem_to_hbm [thread:$0]  %s48, 128, %s2, [#allocation4]
    $region21: #{tpu_custom_call.1} parent=1 // pred_fallthru
      _
    // Predicated region
    $region22: #{tpu_custom_call.1} parent=1 // pred_check
      _
    $region23: #{tpu_custom_call.1} parent=1 // pred_check_branch
      %52 = sbr.rel (0) target = $region25
    $region24: #{tpu_custom_call.1} parent=1 // pred_region
      %53 = dma.done [#allocation4], 128
    $region25: #{tpu_custom_call.1} parent=1 // pred_fallthru
      _
    %54 = vsyncpa [#allocation3], 1
    %55 = vsyncpa [#allocation6], 1
    %56 = vsyncpa [#allocation4], 1

</llo_original>
